<compile_context>
chip_gen: v7x
topology: tpu7x:2x2x1
jax: 0.10.0
libtpu: 0.0.40
codegen_flags: <defaults>
</compile_context>

<pallas_src>
import functools

import jax
import jax.numpy as jnp
from jax.experimental import pallas as pl
from jax.experimental.pallas import tpu as pltpu


def _round_up(a, b):
    return ((a + b - 1) // b) * b


def _select_config(dim):
    """Generation-aware (tile_n, tile_m, vmem_limit_bytes, two_cores, bf16_eup_ok)."""
    # Fallback: do NOT fall back to a tiny config -- (512, 2048) fits the
    # 32 MiB scoped-VMEM default on every generation.
    tile_n, tile_m, vmem_limit, two_cores = 512, 2048, 32 * 1024 * 1024, True
    bf16_eup_ok = True
    try:
        info = pltpu.get_tpu_info()
        vmem_cap = getattr(info, "vmem_capacity_bytes", None)
        if vmem_cap is not None:
            if vmem_cap >= 96 * 1024 * 1024:
                # v5e / v6e: 128 MiB physical VMEM, 1 TC.  8 MiB output tile,
                # ~18 MiB double-buffered working set at small D; ask for
                # 40 MiB (actual need + headroom), not the whole chip.
                tile_n, tile_m, vmem_limit, two_cores = (
                    512, 4096, 40 * 1024 * 1024, False)
            else:
                # v7x: 64 MiB physical / 32 MiB scoped, 2 TCs per chip.
                tile_n, tile_m, vmem_limit, two_cores = (
                    512, 2048, 32 * 1024 * 1024, True)
    except Exception:
        pass
    try:
        kind = jax.devices()[0].device_kind.lower()
        if "v5" in kind:
            bf16_eup_ok = False  # v5e EUP/VPU have no bf16 path
    except Exception:
        pass
    # Very large D: cap tile_m (never tile_n / output rows) so the (D, tile_m)
    # f32 RHS tile stays <= ~4 MiB and the double-buffered set fits the limit.
    if dim >= 512:
        max_tm = max(128, ((4 * 1024 * 1024) // (4 * dim)) // 128 * 128)
        tile_m = min(tile_m, max_tm)
    return tile_n, tile_m, vmem_limit, two_cores, bf16_eup_ok


def _rbf_kernel(x_ref, x1t_ref, xsq_ref, x1sq_ref, o_ref, *, exp_in_bf16):
    # x_ref:    (tile_n, D)       lhs tile
    # x1t_ref:  (D, tile_m)       pre-transposed rhs tile, scaled by -2*scale
    # xsq_ref:  (tile_n, 1)       scale * ||x_i||^2
    # x1sq_ref: (1, tile_m)       scale * ||x1_j||^2
    # o_ref:    (tile_n, tile_m)  (edge blocks masked by Pallas on store)
    s = jnp.dot(x_ref[...], x1t_ref[...], preferred_element_type=jnp.float32)
    s = s + xsq_ref[...] + x1sq_ref[...]          # = scale * ||x_i - x1_j||^2
    # cdist^2 >= 0 and scale < 0  =>  s <= 0 (clamp cancellation noise so the
    # output never exceeds 1, matching the cdist-based reference).
    s = jnp.minimum(s, 0.0)
    if exp_in_bf16:
        # bf16 EUP exp (~2x throughput) -- only taken when the caller already
        # opted into a bf16 output.
        s = s.astype(jnp.bfloat16)
    o_ref[...] = jnp.exp(s).astype(o_ref.dtype)


def rbf_kernel_mean(x, x1=None, h=1.0, *, tile_n=None, tile_m=None,
                    out_dtype=jnp.float32):
    """Pallas equivalent of RBFKernelMean(h).forward(x, x1).

    out_dtype=jnp.bfloat16 is the fast path (halves the dominant HBM
    writeback); keep the default float32 for parity with the torch reference.
    """
    if x1 is None:
        x1 = x
    n, dim = x.shape
    m, dim1 = x1.shape
    assert dim == dim1, "feature dims must match"
    assert h > 0, "bandwidth must be positive"

    tn_d, tm_d, vmem_limit, two_cores, bf16_eup_ok = _select_config(dim)
    tile_n = tile_n if tile_n is not None else tn_d
    tile_m = tile_m if tile_m is not None else tm_d

    # Clamp tiles for small problems; keep sublane/lane alignment (8 / 128).
    tile_n = min(tile_n, _round_up(n, 8))
    tile_m = min(tile_m, _round_up(m, 128))

    # Megacore (2-TC chips): make sure there are >= 2 blocks along a parallel
    # axis before maxing out tile size, so both TensorCores get work.
    if two_cores:
        while (pl.cdiv(n, tile_n) * pl.cdiv(m, tile_m) < 2
               and (tile_m >= 256 or tile_n >= 16)):
            if tile_m >= 256:
                tile_m = _round_up(tile_m // 2, 128)
            else:
                tile_n = _round_up(tile_n // 2, 8)

    grid_n = pl.cdiv(n, tile_n)
    grid_m = pl.cdiv(m, tile_m)
    n_pad = grid_n * tile_n
    m_pad = grid_m * tile_m

    scale = -1.0 / (dim * float(h))

    x_f = x.astype(jnp.float32)
    x1_f = x1.astype(jnp.float32)
    # Zero-pad INPUTS to tile multiples (cheap: O((N+M)*D) bytes) so edge
    # tiles never feed garbage into the MXU.  The OUTPUT is left unpadded at
    # (n, m) and edge-block stores are masked by Pallas -- no extra N*M slice
    # pass over HBM.
    if n_pad != n:
        x_f = jnp.pad(x_f, ((0, n_pad - n), (0, 0)))
    if m_pad != m:
        x1_f = jnp.pad(x1_f, ((0, m_pad - m), (0, 0)))

    # Hoisted out of the grid loop: scaled squared row norms and the
    # pre-transposed, pre-scaled RHS (MXU-natural (K, N) layout, lane-dense).
    x_sq = scale * jnp.sum(x_f * x_f, axis=-1, keepdims=True)        # (n_pad, 1)
    x1_sq = (scale * jnp.sum(x1_f * x1_f, axis=-1))[None, :]         # (1, m_pad)
    x1t = (-2.0 * scale) * x1_f.T                                    # (dim, m_pad)

    out_dtype = jnp.dtype(out_dtype)
    low_precision = out_dtype == jnp.dtype(jnp.bfloat16)
    # Only when the caller already accepted a bf16 output and the kernel is
    # plausibly MXU-bound (large D): feed the MXU bf16 inputs (~3x MXU
    # throughput on v6e/v7x).  Norms and accumulation stay f32.
    if low_precision and dim >= 256:
        x_mm, x1t_mm = x_f.astype(jnp.bfloat16), x1t.astype(jnp.bfloat16)
    else:
        x_mm, x1t_mm = x_f, x1t

    exp_in_bf16 = bool(low_precision and bf16_eup_ok)

    cost = pl.CostEstimate(
        flops=2 * n_pad * m_pad * dim,
        transcendentals=n_pad * m_pad,
        bytes_accessed=(x_mm.size * x_mm.dtype.itemsize
                        + x1t_mm.size * x1t_mm.dtype.itemsize
                        + 4 * (n_pad + m_pad)
                        + n * m * out_dtype.itemsize),
    )

    out = pl.pallas_call(
        functools.partial(_rbf_kernel, exp_in_bf16=exp_in_bf16),
        out_shape=jax.ShapeDtypeStruct((n, m), out_dtype),
        grid_spec=pltpu.PrefetchScalarGridSpec(
            num_scalar_prefetch=0,
            grid=(grid_n, grid_m),
            in_specs=[
                pl.BlockSpec((tile_n, dim), lambda i, j: (i, 0)),
                pl.BlockSpec((dim, tile_m), lambda i, j: (0, j)),
                pl.BlockSpec((tile_n, 1), lambda i, j: (i, 0)),
                pl.BlockSpec((1, tile_m), lambda i, j: (0, j)),
            ],
            out_specs=pl.BlockSpec((tile_n, tile_m), lambda i, j: (i, j)),
        ),
        compiler_params=pltpu.CompilerParams(
            dimension_semantics=("parallel", "parallel"),
            vmem_limit_bytes=int(vmem_limit),
        ),
        cost_estimate=cost,
    )(x_mm, x1t_mm, x_sq, x1_sq)

    return out


class RBFKernelMean:
    """Thin stateful wrapper mirroring the PyTorch module API."""

    def __init__(self, h=1.0):
        self.h = h

    def __call__(self, x, x1=None):
        return rbf_kernel_mean(x, x1, h=self.h)

    def set_bandwidth(self, h):
        self.h = h

    def get_bandwidth(self):
        return self.h


def _reference(x, x1, h):
    # Pure-JAX reference matching torch.cdist(x, x1, 2)**2 / (-dim*h) -> exp
    dim = x.shape[1]
    diff = x[:, None, :].astype(jnp.float32) - x1[None, :, :].astype(jnp.float32)
    d2 = jnp.sum(diff * diff, axis=-1)
    return jnp.exp(d2 / (-dim * h))


if __name__ == "__main__":
    key = jax.random.PRNGKey(0)
    k1, k2 = jax.random.split(key)

    # Small shapes consistent with the module (batch of feature vectors).
    N, M, D = 96, 160, 32
    h = 1.5

    x = jax.random.normal(k1, (N, D), dtype=jnp.float32)
    x1 = jax.random.normal(k2, (M, D), dtype=jnp.float32)

    # Case 1: x1 provided (non-tile-multiple N/M exercise masked edge blocks).
    out = rbf_kernel_mean(x, x1, h=h)
    out = jax.block_until_ready(out)

    # Case 2: x1 is None -> self kernel (diagonal ~1).
    mod = RBFKernelMean(h=1.0)
    out_self = jax.block_until_ready(mod(x))

    ref = _reference(x, x1, h)
    ref_self = _reference(x, x, 1.0)

    assert out.shape == (N, M) and out.dtype == jnp.float32
    assert out_self.shape == (N, N)
    assert jnp.allclose(out, ref, atol=1e-5, rtol=1e-5)
    assert jnp.allclose(out_self, ref_self, atol=1e-5, rtol=1e-5)
    assert jnp.all(out <= 1.0) and jnp.all(out_self <= 1.0)

    print("KERNEL_OK")
</pallas_src>

<mosaic_0001>
module attributes {stable_mosaic.version = 11 : i64} {
  func.func @_rbf_kernel(%arg0: i32, %arg1: i32, %arg2: memref<96x32xf32, #tpu.memory_space<vmem>>, %arg3: memref<32x128xf32, #tpu.memory_space<vmem>>, %arg4: memref<96x1xf32, #tpu.memory_space<vmem>>, %arg5: memref<1x128xf32, #tpu.memory_space<vmem>>, %arg6: memref<96x128xf32, #tpu.memory_space<vmem>>) attributes {dimension_semantics = [#tpu.dimension_semantics<parallel>, #tpu.dimension_semantics<parallel>], iteration_bounds = array<i64: 1, 2>, scalar_prefetch = 0 : i64, scratch_operands = 0 : i64, tpu.core_type = #tpu.core_type<tc>, window_params = [{transform_indices = @transform_0, window_bounds = array<i64: 96, 32>}, {transform_indices = @transform_1, window_bounds = array<i64: 32, 128>}, {transform_indices = @transform_2, window_bounds = array<i64: 96, 1>}, {transform_indices = @transform_3, window_bounds = array<i64: 1, 128>}, {transform_indices = @transform_4, window_bounds = array<i64: 96, 128>}]} {
    %c0 = arith.constant 0 : index
    %c0_0 = arith.constant 0 : index
    %0 = vector.load %arg2[%c0, %c0_0] : memref<96x32xf32, #tpu.memory_space<vmem>>, vector<96x32xf32>
    %c0_1 = arith.constant 0 : index
    %c0_2 = arith.constant 0 : index
    %1 = vector.load %arg3[%c0_1, %c0_2] : memref<32x128xf32, #tpu.memory_space<vmem>>, vector<32x128xf32>
    %cst = arith.constant dense<0.000000e+00> : vector<96x128xf32>
    %2 = tpu.matmul %0, %1, %cst {dimension_numbers = #tpu.dot_dimension_numbers<[1], [0], [0], [1], [0, 0, 1, 1], [], []>} : vector<96x32xf32>, vector<32x128xf32>, vector<96x128xf32> -> vector<96x128xf32>
    %c0_3 = arith.constant 0 : index
    %c0_4 = arith.constant 0 : index
    %3 = vector.load %arg4[%c0_3, %c0_4] : memref<96x1xf32, #tpu.memory_space<vmem>>, vector<96x1xf32>
    %4 = vector.broadcast %3 : vector<96x1xf32> to vector<96x128xf32>
    %5 = arith.addf %2, %4 : vector<96x128xf32>
    %c0_5 = arith.constant 0 : index
    %c0_6 = arith.constant 0 : index
    %6 = vector.load %arg5[%c0_5, %c0_6] : memref<1x128xf32, #tpu.memory_space<vmem>>, vector<1x128xf32>
    %7 = vector.broadcast %6 : vector<1x128xf32> to vector<96x128xf32>
    %8 = arith.addf %5, %7 : vector<96x128xf32>
    %cst_7 = arith.constant 0.000000e+00 : f32
    %9 = vector.broadcast %cst_7 : f32 to vector<96x128xf32>
    %10 = arith.minimumf %8, %9 : vector<96x128xf32>
    %11 = math.exp %10 : vector<96x128xf32>
    %c0_8 = arith.constant 0 : index
    %c0_9 = arith.constant 0 : index
    %12 = vector.load %arg6[%c0_8, %c0_9] : memref<96x128xf32, #tpu.memory_space<vmem>>, vector<96x128xf32>
    tpu.vector_store %arg6[%c0_8, %c0_9], %11 {strides = array<i32>} : memref<96x128xf32, #tpu.memory_space<vmem>>, vector<96x128xf32>,
    return
  }
  func.func @transform_0(%arg0: i32, %arg1: i32) -> (i32, i32) {
    %c0_i32 = arith.constant 0 : i32
    %c0_i32_0 = arith.constant 0 : i32
    return %arg0, %c0_i32 : i32, i32
  }
  func.func @transform_1(%arg0: i32, %arg1: i32) -> (i32, i32) {
    %c0_i32 = arith.constant 0 : i32
    %c0_i32_0 = arith.constant 0 : i32
    return %c0_i32, %arg1 : i32, i32
  }
  func.func @transform_2(%arg0: i32, %arg1: i32) -> (i32, i32) {
    %c0_i32 = arith.constant 0 : i32
    %c0_i32_0 = arith.constant 0 : i32
    return %arg0, %c0_i32 : i32, i32
  }
  func.func @transform_3(%arg0: i32, %arg1: i32) -> (i32, i32) {
    %c0_i32 = arith.constant 0 : i32
    %c0_i32_0 = arith.constant 0 : i32
    return %c0_i32, %arg1 : i32, i32
  }
  func.func @transform_4(%arg0: i32, %arg1: i32) -> (i32, i32) {
    %c0_i32 = arith.constant 0 : i32
    return %arg0, %arg1 : i32, i32
  }
}

</mosaic_0001>

<llo_original>
// kernel: tpu_custom_call.1
$region0: #{tpu_custom_call.1}
  #allocation0 [shape = 'u32[]', space=smem, size = 0x4, offset = 0x4, fixed_abs, tag = 'smem constant byte address 0x4 - core index']
  #allocation1 [shape = 'u32[144,128]{1,0:T(1,128)}', space=vmem, size = 0x12000, scoped, tag = 'internal scratch']
  %s0 = inlined_call_operand.vmem [shape: f32[96,32], index: 0, kind: input, shape index: {}]
  %s1 = inlined_call_operand.vmem [shape: f32[32,256], index: 1, kind: input, shape index: {}]
  %s2 = inlined_call_operand.vmem [shape: f32[96,1], index: 2, kind: input, shape index: {}]
  %s3 = inlined_call_operand.vmem [shape: f32[1,256], index: 3, kind: input, shape index: {}]
  %s4 = inlined_call_operand.vmem [shape: f32[96,160], index: 4, kind: output, shape index: {}]
  %s5 = sld [smem:[#allocation0]]
  $region121: #{tpu_custom_call.1} parent=0
    _
  %s7 = ssub.s32 1, %s5
  %s8 = scalar_select 0, %s7, %s5
  $region1: #{tpu_custom_call.1} parent=0
    #allocation2 [shape = 'u8[32768]{0}', space=vmem, size = 0x8000, scoped, tag = 'input window, operand 1']
    #allocation3 [shape = 'u8[98304]{0}', space=vmem, size = 0x18000, scoped, tag = 'output window, operand 0']
    loop: start=0, step=1, limit=4
    $region2: #{tpu_custom_call.1} parent=1 // loop_pre_header
      _
    $region3: #{tpu_custom_call.1} parent=1 // loop_header
      %s10 = sphi 0, %s14
      %p11 = scmp.ge.s32.totalorder %s10, 4
      %s17 = sphi 0, %s29
      %s18 = sphi 0, %s25
      %s19 = sphi 0, %s17
      %s20 = sphi 0, %s18
      %s21 = sphi 0, %s19
      %s22 = sphi 0, %s20
      %s32 = sphi 0, %s34
      %s35 = sphi 0, %s32
      %s36 = sphi 0, %s35
      %s52 = sphi 0, %s36
      %s58 = sphi 0, %s60
      %s61 = sphi 0, %s58
      %s62 = sphi 0, %s61
      %s78 = sphi 0, %s62
      %s84 = sphi 0, %s86
      %s87 = sphi 0, %s84
      %s88 = sphi 0, %s87
      %s104 = sphi 0, %s88
      %s110 = sphi 0, %s112
      %s113 = sphi 0, %s110
      %s114 = sphi 0, %s113
      %s130 = sphi 0, %s114
      %s138 = sphi 0, %s140
      %s141 = sphi 0, %s138
      %s142 = sphi 0, %s141
      %s158 = sphi 0, %s142
    $region4: #{tpu_custom_call.1} parent=1 // loop_header_branch
      %13 = sbr.rel (%p11) target = $region8
    $region5: #{tpu_custom_call.1} parent=1 // loop_body
      %s15 = ssub.s32 %s10, 1
      %s16 = ssub.s32 %s10, 2
      %s23 = sadd.s32 1, %s18
      %p24 = scmp.ge.s32.totalorder %s23, 2
      %s25 = scalar_select %p24, 0, %s23
      %s26 = sadd.s32 1, %s17
      %s27 = scalar_select %p24, %s26, %s17
      %p28 = scmp.ge.s32.totalorder %s27, 1
      %s29 = scalar_select %p28, 0, %s27
      %s30 = ssub.s32 %s17, %s29
      %p31 = scmp.eq.s32.totalorder %s30, 0
      %s33 = sadd.s32 %s32, 1
      %s34 = scalar_select %p31, %s32, %s33
      %p37 = pneg %p31
      %p38 = scmp.eq.s32.totalorder %s10, 1
      %p39 = por %p37, %p38
      %p40 = scmp.ne.s32.totalorder %s32, %s35
      %p41 = scmp.eq.s32.totalorder %s10, 0
      %p42 = por %p40, %p41
      %p43 = scmp.ne.s32.totalorder %s32, %s35
      %p44 = scmp.eq.s32.totalorder %s15, 1
      %p45 = por %p43, %p44
      %p46 = scmp.ne.s32.totalorder %s35, %s36
      %p47 = scmp.eq.s32.totalorder %s15, 0
      %p48 = por %p46, %p47
      %p49 = scmp.ne.s32.totalorder %s35, %s36
      %p50 = scmp.eq.s32.totalorder %s16, 1
      %p51 = por %p49, %p50
      %p53 = scmp.ne.s32.totalorder %s36, %s52
      %p54 = scmp.eq.s32.totalorder %s16, 0
      %p55 = por %p53, %p54
      %s56 = ssub.s32 %s18, %s25
      %p57 = scmp.eq.s32.totalorder %s56, 0
      %s59 = sadd.s32 %s58, 1
      %s60 = scalar_select %p57, %s58, %s59
      %p63 = pneg %p57
      %p64 = scmp.eq.s32.totalorder %s10, 1
      %p65 = por %p63, %p64
      %p66 = scmp.ne.s32.totalorder %s58, %s61
      %p67 = scmp.eq.s32.totalorder %s10, 0
      %p68 = por %p66, %p67
      %p69 = scmp.ne.s32.totalorder %s58, %s61
      %p70 = scmp.eq.s32.totalorder %s15, 1
      %p71 = por %p69, %p70
      %p72 = scmp.ne.s32.totalorder %s61, %s62
      %p73 = scmp.eq.s32.totalorder %s15, 0
      %p74 = por %p72, %p73
      %p75 = scmp.ne.s32.totalorder %s61, %s62
      %p76 = scmp.eq.s32.totalorder %s16, 1
      %p77 = por %p75, %p76
      %p79 = scmp.ne.s32.totalorder %s62, %s78
      %p80 = scmp.eq.s32.totalorder %s16, 0
      %p81 = por %p79, %p80
      %s82 = ssub.s32 %s17, %s29
      %p83 = scmp.eq.s32.totalorder %s82, 0
      %s85 = sadd.s32 %s84, 1
      %s86 = scalar_select %p83, %s84, %s85
      %p89 = pneg %p83
      %p90 = scmp.eq.s32.totalorder %s10, 1
      %p91 = por %p89, %p90
      %p92 = scmp.ne.s32.totalorder %s84, %s87
      %p93 = scmp.eq.s32.totalorder %s10, 0
      %p94 = por %p92, %p93
      %p95 = scmp.ne.s32.totalorder %s84, %s87
      %p96 = scmp.eq.s32.totalorder %s15, 1
      %p97 = por %p95, %p96
      %p98 = scmp.ne.s32.totalorder %s87, %s88
      %p99 = scmp.eq.s32.totalorder %s15, 0
      %p100 = por %p98, %p99
      %p101 = scmp.ne.s32.totalorder %s87, %s88
      %p102 = scmp.eq.s32.totalorder %s16, 1
      %p103 = por %p101, %p102
      %p105 = scmp.ne.s32.totalorder %s88, %s104
      %p106 = scmp.eq.s32.totalorder %s16, 0
      %p107 = por %p105, %p106
      %s108 = ssub.s32 %s18, %s25
      %p109 = scmp.eq.s32.totalorder %s108, 0
      %s111 = sadd.s32 %s110, 1
      %s112 = scalar_select %p109, %s110, %s111
      %p115 = pneg %p109
      %p116 = scmp.eq.s32.totalorder %s10, 1
      %p117 = por %p115, %p116
      %p118 = scmp.ne.s32.totalorder %s110, %s113
      %p119 = scmp.eq.s32.totalorder %s10, 0
      %p120 = por %p118, %p119
      %p121 = scmp.ne.s32.totalorder %s110, %s113
      %p122 = scmp.eq.s32.totalorder %s15, 1
      %p123 = por %p121, %p122
      %p124 = scmp.ne.s32.totalorder %s113, %s114
      %p125 = scmp.eq.s32.totalorder %s15, 0
      %p126 = por %p124, %p125
      %p127 = scmp.ne.s32.totalorder %s113, %s114
      %p128 = scmp.eq.s32.totalorder %s16, 1
      %p129 = por %p127, %p128
      %p131 = scmp.ne.s32.totalorder %s114, %s130
      %p132 = scmp.eq.s32.totalorder %s16, 0
      %p133 = por %p131, %p132
      %s134 = ssub.s32 %s17, %s29
      %s135 = ssub.s32 %s18, %s25
      %s136 = sor.u32 %s134, %s135
      %p137 = scmp.eq.s32.totalorder %s136, 0
      %s139 = sadd.s32 %s138, 1
      %s140 = scalar_select %p137, %s138, %s139
      %p143 = pneg %p137
      %p144 = scmp.eq.s32.totalorder %s10, 1
      %p145 = por %p143, %p144
      %p146 = scmp.ne.s32.totalorder %s138, %s141
      %p147 = scmp.eq.s32.totalorder %s10, 0
      %p148 = por %p146, %p147
      %p149 = scmp.ne.s32.totalorder %s138, %s141
      %p150 = scmp.eq.s32.totalorder %s15, 1
      %p151 = por %p149, %p150
      %p152 = scmp.ne.s32.totalorder %s141, %s142
      %p153 = scmp.eq.s32.totalorder %s15, 0
      %p154 = por %p152, %p153
      %p155 = scmp.ne.s32.totalorder %s141, %s142
      %p156 = scmp.eq.s32.totalorder %s16, 1
      %p157 = por %p155, %p156
      %p159 = scmp.ne.s32.totalorder %s142, %s158
      %p160 = scmp.eq.s32.totalorder %s16, 0
      %p161 = por %p159, %p160
      %p162 = scmp.le.s32.totalorder 1, %s10
      %p163 = scmp.lt.s32.totalorder %s10, 3
      %p164 = pnand %p162, %p163
      %p165 = pneg %p164
      // Predicated region
      $region9: #{tpu_custom_call.1} parent=5 // pred_check
        _
      $region10: #{tpu_custom_call.1} parent=5 // pred_check_branch
        %167 = sbr.rel (%p164) target = $region12
      $region11: #{tpu_custom_call.1} parent=5 // pred_region
        %s168 = ssub.s32 %s10, 1
        // Predicated region
        $region13: #{tpu_custom_call.1} parent=11 // pred_check
          %p169 = pneg %p48
        $region14: #{tpu_custom_call.1} parent=11 // pred_check_branch
          %171 = sbr.rel (%p169) target = $region16
        $region15: #{tpu_custom_call.1} parent=11 // pred_region
          %s172 = smul.u32 12, %s19
          %p173 = scmp.lt.s32.totalorder %s172, 11
          %s174 = scalar_select %p173, %s172, 11
          %s175 = smul.addr %s174, 8
          %s176 = scalar_lea.vmem %s0, %s175
          %s177 = smul.u32 12, %s19
        $region16: #{tpu_custom_call.1} parent=11 // pred_fallthru
          _
        // Predicated region
        $region17: #{tpu_custom_call.1} parent=11 // pred_check
          %p178 = pneg %p100
        $region18: #{tpu_custom_call.1} parent=11 // pred_check_branch
          %180 = sbr.rel (%p178) target = $region20
        $region19: #{tpu_custom_call.1} parent=11 // pred_region
          %s181 = smul.u32 12, %s19
          %p182 = scmp.lt.s32.totalorder %s181, 11
          %s183 = scalar_select %p182, %s181, 11
          %s184 = smul.addr %s183, 8
          %s185 = scalar_lea.vmem %s2, %s184
          %s186 = smul.u32 12, %s19
        $region20: #{tpu_custom_call.1} parent=11 // pred_fallthru
          _
      $region12: #{tpu_custom_call.1} parent=5 // pred_fallthru
        _
      %p187 = scmp.lt.s32.totalorder %s10, 2
      // Predicated region
      $region21: #{tpu_custom_call.1} parent=5 // pred_check
        %p188 = pneg %p187
      $region22: #{tpu_custom_call.1} parent=5 // pred_check_branch
        %190 = sbr.rel (%p188) target = $region24
      $region23: #{tpu_custom_call.1} parent=5 // pred_region
        // Predicated region
        $region25: #{tpu_custom_call.1} parent=23 // pred_check
          %p191 = pneg %p68
        $region26: #{tpu_custom_call.1} parent=23 // pred_check_branch
          %193 = sbr.rel (%p191) target = $region28
        $region27: #{tpu_custom_call.1} parent=23 // pred_region
          %s194 = sand.u32 %s58, 1
          %s195 = sand.u32 %s58, 1
          %s196 = smul.addr %s195, 32
          %s197 = scalar_lea.vmem [#allocation2], %s196
          %s198 = smul.addr %s18, 8
          %s199 = scalar_lea.vmem %s1, %s198
          // Predicated region
          $region29: #{tpu_custom_call.1} parent=27 // pred_check
            _
          $region30: #{tpu_custom_call.1} parent=27 // pred_check_branch
            %201 = sbr.rel (0) target = $region32
          $region31: #{tpu_custom_call.1} parent=27 // pred_region
            // Predicated region
            $region33: #{tpu_custom_call.1} parent=31 // pred_check
              _
            $region34: #{tpu_custom_call.1} parent=31 // pred_check_branch
              %203 = sbr.rel (0) target = $region36
            $region35: #{tpu_custom_call.1} parent=31 // pred_region
              // Predicated region
              $region48: #{tpu_custom_call.1} parent=35 // pred_check
                _
              $region49: #{tpu_custom_call.1} parent=35 // pred_check_branch
                %224 = sbr.rel (0) target = $region51
              $region50: #{tpu_custom_call.1} parent=35 // pred_region
                loop: start=0, step=1, limit=1
                $region52: #{tpu_custom_call.1} parent=50 // loop_pre_header
                  _
                $region53: #{tpu_custom_call.1} parent=50 // loop_header
                  %s226 = sphi 0, %s230
                  %p227 = scmp.ge.s32.totalorder %s226, 1
                  %s231 = sphi %s199, %s199
                  %s232 = sphi %s197, %s197
                $region54: #{tpu_custom_call.1} parent=50 // loop_header_branch
                  %229 = sbr.rel (%p227) target = $region58
                $region55: #{tpu_custom_call.1} parent=50 // loop_body
                  %v233 = vld [vmem:[%s231] sm:$0xff]
                  %234 = vst [vmem:[%s232] sm:$0xff] %v233
                  %v235 = vld [vmem:[%s231 + $0x10] sm:$0xff]
                  %236 = vst [vmem:[%s232 + $0x8] sm:$0xff] %v235
                  %v237 = vld [vmem:[%s231 + $0x20] sm:$0xff]
                  %238 = vst [vmem:[%s232 + $0x10] sm:$0xff] %v237
                  %v239 = vld [vmem:[%s231 + $0x30] sm:$0xff]
                  %240 = vst [vmem:[%s232 + $0x18] sm:$0xff] %v239
                $region56: #{tpu_custom_call.1} parent=50 // loop_footer
                  %s230 = sadd.s32 1, %s226
                $region57: #{tpu_custom_call.1} parent=50 // loop_footer_branch
                  %225 = sbr.rel target = $region53
                $region58: #{tpu_custom_call.1} parent=50 // loop_exit
                  _
              $region51: #{tpu_custom_call.1} parent=35 // pred_fallthru
                _
              // Predicated region
              $region59: #{tpu_custom_call.1} parent=35 // pred_check
                _
              $region60: #{tpu_custom_call.1} parent=35 // pred_check_branch
                %242 = sbr.rel target = $region62
              $region61: #{tpu_custom_call.1} parent=35 // pred_region
                _
              $region62: #{tpu_custom_call.1} parent=35 // pred_fallthru
                _
            $region36: #{tpu_custom_call.1} parent=31 // pred_fallthru
              _
            // Predicated region
            $region37: #{tpu_custom_call.1} parent=31 // pred_check
              _
            $region38: #{tpu_custom_call.1} parent=31 // pred_check_branch
              %205 = sbr.rel target = $region40
            $region39: #{tpu_custom_call.1} parent=31 // pred_region
              loop: start=0, step=1, limit=1
              $region41: #{tpu_custom_call.1} parent=39 // loop_pre_header
                _
              $region42: #{tpu_custom_call.1} parent=39 // loop_header
                %s208 = sphi 0, %s212
                %p209 = scmp.ge.s32.totalorder %s208, 1
                %s213 = sphi %s199, %s199
                %s214 = sphi %s197, %s197
              $region43: #{tpu_custom_call.1} parent=39 // loop_header_branch
                %211 = sbr.rel (%p209) target = $region47
              $region44: #{tpu_custom_call.1} parent=39 // loop_body
                %v215 = vld [vmem:[%s213] sm:$0xff]
                %216 = vst [vmem:[%s214] sm:$0xff] %v215
                %v217 = vld [vmem:[%s213 + $0x10] sm:$0xff]
                %218 = vst [vmem:[%s214 + $0x8] sm:$0xff] %v217
                %v219 = vld [vmem:[%s213 + $0x20] sm:$0xff]
                %220 = vst [vmem:[%s214 + $0x10] sm:$0xff] %v219
                %v221 = vld [vmem:[%s213 + $0x30] sm:$0xff]
                %222 = vst [vmem:[%s214 + $0x18] sm:$0xff] %v221
              $region45: #{tpu_custom_call.1} parent=39 // loop_footer
                %s212 = sadd.s32 1, %s208
              $region46: #{tpu_custom_call.1} parent=39 // loop_footer_branch
                %207 = sbr.rel target = $region42
              $region47: #{tpu_custom_call.1} parent=39 // loop_exit
                _
            $region40: #{tpu_custom_call.1} parent=31 // pred_fallthru
              _
          $region32: #{tpu_custom_call.1} parent=27 // pred_fallthru
            _
          %243 = vnop
        $region28: #{tpu_custom_call.1} parent=23 // pred_fallthru
          _
        // Predicated region
        $region63: #{tpu_custom_call.1} parent=23 // pred_check
          %p244 = pneg %p120
        $region64: #{tpu_custom_call.1} parent=23 // pred_check_branch
          %246 = sbr.rel (%p244) target = $region66
        $region65: #{tpu_custom_call.1} parent=23 // pred_region
          %p247 = scmp.lt.s32.totalorder %s18, 1
          %s248 = scalar_select %p247, %s18, 1
          %s249 = scalar_lea.vmem %s3, %s248
        $region66: #{tpu_custom_call.1} parent=23 // pred_fallthru
          _
      $region24: #{tpu_custom_call.1} parent=5 // pred_fallthru
        _
      %p250 = scmp.le.s32.totalorder 1, %s10
      %p251 = scmp.lt.s32.totalorder %s10, 3
      %p252 = pnand %p250, %p251
      %p253 = pneg %p252
      // Predicated region
      $region67: #{tpu_custom_call.1} parent=5 // pred_check
        _
      $region68: #{tpu_custom_call.1} parent=5 // pred_check_branch
        %255 = sbr.rel (%p252) target = $region70
      $region69: #{tpu_custom_call.1} parent=5 // pred_region
        %s256 = ssub.s32 %s10, 1
        %s257 = sand.u32 %s61, 1
        %s258 = sand.u32 %s61, 1
        %s259 = smul.addr %s258, 32
        %s260 = scalar_lea.vmem [#allocation2], %s259
        // Predicated region
        $region71: #{tpu_custom_call.1} parent=69 // pred_check
          %p261 = pneg %p74
        $region72: #{tpu_custom_call.1} parent=69 // pred_check_branch
          %263 = sbr.rel (%p261) target = $region74
        $region73: #{tpu_custom_call.1} parent=69 // pred_region
          _
        $region74: #{tpu_custom_call.1} parent=69 // pred_fallthru
          _
        %s264 = smul.u32 12, %s19
        %p265 = scmp.lt.s32.totalorder %s264, 11
        %s266 = scalar_select %p265, %s264, 11
        %s267 = smul.addr %s266, 8
        %s268 = scalar_lea.vmem %s0, %s267
        %p269 = pneg %p48
        %p270 = pneg %p45
        %s271 = sand.u32 %s61, 1
        %s272 = sand.u32 %s61, 1
        %s273 = smul.addr %s272, 32
        %s274 = scalar_lea.vmem [#allocation2], %s273
        %p275 = pneg %p74
        %p276 = pneg %p71
        %s277 = smul.u32 12, %s19
        %p278 = scmp.lt.s32.totalorder %s277, 11
        %s279 = scalar_select %p278, %s277, 11
        %s280 = smul.addr %s279, 8
        %s281 = scalar_lea.vmem %s2, %s280
        %p282 = pneg %p100
        %p283 = pneg %p97
        %p284 = scmp.lt.s32.totalorder %s20, 1
        %s285 = scalar_select %p284, %s20, 1
        %s286 = scalar_lea.vmem %s3, %s285
        %p287 = pneg %p126
        %p288 = pneg %p123
        %p289 = pneg %p154
        %p290 = pneg %p151
        %s291 = sand.u32 %s141, 1
        %s292 = sand.u32 %s141, 1
        %s293 = smul.addr %s292, 96
        %s294 = scalar_lea.vmem [#allocation3], %s293
        %s295 = smul.u32 12, %s19
        %p296 = scmp.lt.s32.totalorder %s295, 11
        %s297 = scalar_select %p296, %s295, 11
        %s298 = smul.addr %s297, 8
        %s299 = scalar_lea.vmem %s0, %s298
        %s300 = smul.u32 12, %s19
        %s301 = smul.u32 12, %s19
        %p302 = scmp.lt.s32.totalorder %s301, 11
        %s303 = scalar_select %p302, %s301, 11
        %s304 = smul.addr %s303, 8
        %s305 = scalar_lea.vmem %s2, %s304
        %s306 = smul.u32 12, %s19
        %p307 = scmp.lt.s32.totalorder %s20, 1
        %s308 = scalar_select %p307, %s20, 1
        %s309 = scalar_lea.vmem %s3, %s308
        %s310 = smul.u32 12, %s19
        %v311 = vld [vmem:[%s299] sm:$0xff]
        %v312 = vld [vmem:[%s299 + $0x8] sm:$0xff]
        %v313 = vld [vmem:[%s299 + $0x10] sm:$0xff]
        %v314 = vld [vmem:[%s299 + $0x18] sm:$0xff]
        %v315 = vld [vmem:[%s299 + $0x20] sm:$0xff]
        %v316 = vld [vmem:[%s299 + $0x28] sm:$0xff]
        %v317 = vld [vmem:[%s299 + $0x30] sm:$0xff]
        %v318 = vld [vmem:[%s299 + $0x38] sm:$0xff]
        %v319 = vld [vmem:[%s299 + $0x40] sm:$0xff]
        %v320 = vld [vmem:[%s299 + $0x48] sm:$0xff]
        %v321 = vld [vmem:[%s299 + $0x50] sm:$0xff]
        %v322 = vld [vmem:[%s299 + $0x58] sm:$0xff]
        %v323 = vld [vmem:[%s260] sm:$0xff]
        %v324 = vld [vmem:[%s260 + $0x8] sm:$0xff]
        %v325 = vld [vmem:[%s260 + $0x10] sm:$0xff]
        %v326 = vld [vmem:[%s260 + $0x18] sm:$0xff]
        %v327 = vld [vmem:[%s305] sm:$0xff]
        %v328 = vld [vmem:[%s305 + $0x8] sm:$0xff]
        %v329 = vld [vmem:[%s305 + $0x10] sm:$0xff]
        %v330 = vld [vmem:[%s305 + $0x18] sm:$0xff]
        %v331 = vld [vmem:[%s305 + $0x20] sm:$0xff]
        %v332 = vld [vmem:[%s305 + $0x28] sm:$0xff]
        %v333 = vld [vmem:[%s305 + $0x30] sm:$0xff]
        %v334 = vld [vmem:[%s305 + $0x38] sm:$0xff]
        %v335 = vld [vmem:[%s305 + $0x40] sm:$0xff]
        %v336 = vld [vmem:[%s305 + $0x48] sm:$0xff]
        %v337 = vld [vmem:[%s305 + $0x50] sm:$0xff]
        %v338 = vld [vmem:[%s305 + $0x58] sm:$0xff]
        %340 = vset.pattern.permute.xlu0 0
        %341 = vperm.xlu0 %340, %v327
        %v342 = vpop.permute.xlu0 %341
        %345 = vset.pattern.permute.xlu0 0
        %346 = vperm.xlu0 %345, %v328
        %v347 = vpop.permute.xlu0 %346
        %350 = vset.pattern.permute.xlu0 0
        %351 = vperm.xlu0 %350, %v329
        %v352 = vpop.permute.xlu0 %351
        %355 = vset.pattern.permute.xlu0 0
        %356 = vperm.xlu0 %355, %v330
        %v357 = vpop.permute.xlu0 %356
        %360 = vset.pattern.permute.xlu0 0
        %361 = vperm.xlu0 %360, %v331
        %v362 = vpop.permute.xlu0 %361
        %365 = vset.pattern.permute.xlu0 0
        %366 = vperm.xlu0 %365, %v332
        %v367 = vpop.permute.xlu0 %366
        %370 = vset.pattern.permute.xlu0 0
        %371 = vperm.xlu0 %370, %v333
        %v372 = vpop.permute.xlu0 %371
        %375 = vset.pattern.permute.xlu0 0
        %376 = vperm.xlu0 %375, %v334
        %v377 = vpop.permute.xlu0 %376
        %380 = vset.pattern.permute.xlu0 0
        %381 = vperm.xlu0 %380, %v335
        %v382 = vpop.permute.xlu0 %381
        %385 = vset.pattern.permute.xlu0 0
        %386 = vperm.xlu0 %385, %v336
        %v387 = vpop.permute.xlu0 %386
        %390 = vset.pattern.permute.xlu0 0
        %391 = vperm.xlu0 %390, %v337
        %v392 = vpop.permute.xlu0 %391
        %395 = vset.pattern.permute.xlu0 0
        %396 = vperm.xlu0 %395, %v338
        %v397 = vpop.permute.xlu0 %396
        %vm399 = vcmask 261120
        %v401 = vsel %vm399, %v311, 0
        %v404 = vsel %vm399, %v312, 0
        %v407 = vsel %vm399, %v313, 0
        %v410 = vsel %vm399, %v314, 0
        %v413 = vsel %vm399, %v315, 0
        %v416 = vsel %vm399, %v316, 0
        %v419 = vsel %vm399, %v317, 0
        %v422 = vsel %vm399, %v318, 0
        %v425 = vsel %vm399, %v319, 0
        %v428 = vsel %vm399, %v320, 0
        %v431 = vsel %vm399, %v321, 0
        %v434 = vsel %vm399, %v322, 0
        %436 = vmatprep.subr.mxu0 0.0
        %437 = vmatpush1.msra.mxu0 %v323
        %438 = vmatprep.subr.mxu0 0.0
        %439 = vmatpush1.msra.mxu0 %v324
        %440 = vmatprep.subr.mxu0 0.0
        %441 = vmatpush1.msra.mxu0 %v325
        %442 = vmatprep.subr.mxu0 0.0
        %443 = vmatpush1.msra.mxu0 %v326
        %444 = vmatprep.subr.mxu0 0.0
        %445 = vmatpush1.msra.mxu0 0.0
        %446 = vmatprep.subr.mxu0 0.0
        %447 = vmatpush1.msra.mxu0 0.0
        %448 = vmatprep.subr.mxu0 0.0
        %449 = vmatpush1.msra.mxu0 0.0
        %450 = vmatprep.subr.mxu0 0.0
        %451 = vmatpush1.msra.mxu0 0.0
        %452 = vmatprep.subr.mxu0 0.0
        %453 = vmatpush1.msra.mxu0 0.0
        %454 = vmatprep.subr.mxu0 0.0
        %455 = vmatpush1.msra.mxu0 0.0
        %456 = vmatprep.subr.mxu0 0.0
        %457 = vmatpush1.msra.mxu0 0.0
        %458 = vmatprep.subr.mxu0 0.0
        %459 = vmatpush1.msra.mxu0 0.0
        %460 = vmatprep.subr.mxu0 0.0
        %461 = vmatpush1.msra.mxu0 0.0
        %462 = vmatprep.subr.mxu0 0.0
        %463 = vmatpush1.msra.mxu0 0.0
        %464 = vmatprep.subr.mxu0 0.0
        %465 = vmatpush1.msra.mxu0 0.0
        %466 = vmatprep.subr.mxu0 0.0
        %467 = vmatpush1.msra.mxu0 0.0
        %468 = vmatprep.subr.mxu0 0.0
        %469 = vmatpush1.msra.mxu0 0.0
        %470 = vmatprep.subr.mxu0 0.0
        %471 = vmatpush1.msra.mxu0 0.0
        %472 = vmatprep.subr.mxu0 0.0
        %473 = vmatpush1.msra.mxu0 0.0
        %474 = vmatprep.subr.mxu0 0.0
        %475 = vmatpush1.msra.mxu0 0.0
        %476 = vmatprep.subr.mxu0 0.0
        %477 = vmatpush1.msra.mxu0 0.0
        %478 = vmatprep.subr.mxu0 0.0
        %479 = vmatpush1.msra.mxu0 0.0
        %480 = vmatprep.subr.mxu0 0.0
        %481 = vmatpush1.msra.mxu0 0.0
        %482 = vmatprep.subr.mxu0 0.0
        %483 = vmatpush1.msra.mxu0 0.0
        %484 = vmatprep.subr.mxu0 0.0
        %485 = vmatpush1.msra.mxu0 0.0
        %486 = vmatprep.subr.mxu0 0.0
        %487 = vmatpush1.msra.mxu0 0.0
        %488 = vmatprep.subr.mxu0 0.0
        %489 = vmatpush1.msra.mxu0 0.0
        %490 = vmatprep.subr.mxu0 0.0
        %491 = vmatpush1.msra.mxu0 0.0
        %492 = vmatprep.subr.mxu0 0.0
        %493 = vmatpush1.msra.mxu0 0.0
        %494 = vmatprep.subr.mxu0 0.0
        %495 = vmatpush1.msra.mxu0 0.0
        %496 = vmatprep.subr.mxu0 0.0
        %497 = vmatpush1.msra.mxu0 0.0
        %498 = vmatprep.subr.mxu0 0.0
        %499 = vmatpush1.msra.mxu0 0.0
        %500 = vmatprep.mubr.f32.mxu0 0.0
        %501 = vmatmul.mubr.f32.gmra.mrb[0].mxu0 %v401
        %v502 = vpop.f32.mrb[0].mxu0
        %v503 = vadd.f32 %v342, %v502
        %v504 = vpop.f32.mrb[0].mxu0
        %505 = vmatprep.mubr.f32.mxu0 0.0
        %506 = vmatmul.mubr.f32.gmra.mrb[0].mxu0 %v404
        %v507 = vpop.f32.mrb[0].mxu0
        %v508 = vadd.f32 %v347, %v507
        %v509 = vpop.f32.mrb[0].mxu0
        %510 = vmatprep.mubr.f32.mxu0 0.0
        %511 = vmatmul.mubr.f32.gmra.mrb[0].mxu0 %v407
        %v512 = vpop.f32.mrb[0].mxu0
        %v513 = vadd.f32 %v352, %v512
        %v514 = vpop.f32.mrb[0].mxu0
        %515 = vmatprep.mubr.f32.mxu0 0.0
        %516 = vmatmul.mubr.f32.gmra.mrb[0].mxu0 %v410
        %v517 = vpop.f32.mrb[0].mxu0
        %v518 = vadd.f32 %v357, %v517
        %v519 = vpop.f32.mrb[0].mxu0
        %520 = vmatprep.mubr.f32.mxu0 0.0
        %521 = vmatmul.mubr.f32.gmra.mrb[0].mxu0 %v413
        %v522 = vpop.f32.mrb[0].mxu0
        %v523 = vadd.f32 %v362, %v522
        %v524 = vpop.f32.mrb[0].mxu0
        %525 = vmatprep.mubr.f32.mxu0 0.0
        %526 = vmatmul.mubr.f32.gmra.mrb[0].mxu0 %v416
        %v527 = vpop.f32.mrb[0].mxu0
        %v528 = vadd.f32 %v367, %v527
        %v529 = vpop.f32.mrb[0].mxu0
        %530 = vmatprep.mubr.f32.mxu0 0.0
        %531 = vmatmul.mubr.f32.gmra.mrb[0].mxu0 %v419
        %v532 = vpop.f32.mrb[0].mxu0
        %v533 = vadd.f32 %v372, %v532
        %v534 = vpop.f32.mrb[0].mxu0
        %535 = vmatprep.mubr.f32.mxu0 0.0
        %536 = vmatmul.mubr.f32.gmra.mrb[0].mxu0 %v422
        %v537 = vpop.f32.mrb[0].mxu0
        %v538 = vadd.f32 %v377, %v537
        %v539 = vpop.f32.mrb[0].mxu0
        %540 = vmatprep.mubr.f32.mxu0 0.0
        %541 = vmatmul.mubr.f32.gmra.mrb[0].mxu0 %v425
        %v542 = vpop.f32.mrb[0].mxu0
        %v543 = vadd.f32 %v382, %v542
        %v544 = vpop.f32.mrb[0].mxu0
        %545 = vmatprep.mubr.f32.mxu0 0.0
        %546 = vmatmul.mubr.f32.gmra.mrb[0].mxu0 %v428
        %v547 = vpop.f32.mrb[0].mxu0
        %v548 = vadd.f32 %v387, %v547
        %v549 = vpop.f32.mrb[0].mxu0
        %550 = vmatprep.mubr.f32.mxu0 0.0
        %551 = vmatmul.mubr.f32.gmra.mrb[0].mxu0 %v431
        %v552 = vpop.f32.mrb[0].mxu0
        %v553 = vadd.f32 %v392, %v552
        %v554 = vpop.f32.mrb[0].mxu0
        %555 = vmatprep.mubr.f32.mxu0 0.0
        %556 = vmatmul.mubr.f32.gmra.mrb[0].mxu0 %v434
        %v557 = vpop.f32.mrb[0].mxu0
        %v558 = vadd.f32 %v397, %v557
        %v559 = vpop.f32.mrb[0].mxu0
        %560 = vdwg.mxu0
        %v561 = vld [vmem:[%s309] sm:$0x1]
        %v563 = vlaneseq
        %v564 = vshrl.u32 %v563, 7
        %v565 = vsub.s32 0, %v564
        %v566 = vrot.slane %v561, %v565
        %v568 = vadd.f32 %v503, %v566
        %v569 = vadd.f32 %v508, %v566
        %v570 = vadd.f32 %v513, %v566
        %v571 = vadd.f32 %v518, %v566
        %v572 = vadd.f32 %v523, %v566
        %v573 = vadd.f32 %v528, %v566
        %v574 = vadd.f32 %v533, %v566
        %v575 = vadd.f32 %v538, %v566
        %v576 = vadd.f32 %v543, %v566
        %v577 = vadd.f32 %v548, %v566
        %v578 = vadd.f32 %v553, %v566
        %v579 = vadd.f32 %v558, %v566
        %v580 = vmin.f32 %v568, 0.0
        %v581 = vmin.f32 %v569, 0.0
        %v582 = vmin.f32 %v570, 0.0
        %v583 = vmin.f32 %v571, 0.0
        %v584 = vmin.f32 %v572, 0.0
        %v585 = vmin.f32 %v573, 0.0
        %v586 = vmin.f32 %v574, 0.0
        %v587 = vmin.f32 %v575, 0.0
        %v588 = vmin.f32 %v576, 0.0
        %v589 = vmin.f32 %v577, 0.0
        %v590 = vmin.f32 %v578, 0.0
        %v591 = vmin.f32 %v579, 0.0
        %v592 = vmul.f32 %v580, 1.442695
        %v593 = vpow.pop %v592
        %v594 = vmul.f32 %v581, 1.442695
        %v595 = vpow.pop %v594
        %v596 = vmul.f32 %v582, 1.442695
        %v597 = vpow.pop %v596
        %v598 = vmul.f32 %v583, 1.442695
        %v599 = vpow.pop %v598
        %v600 = vmul.f32 %v584, 1.442695
        %v601 = vpow.pop %v600
        %v602 = vmul.f32 %v585, 1.442695
        %v603 = vpow.pop %v602
        %v604 = vmul.f32 %v586, 1.442695
        %v605 = vpow.pop %v604
        %v606 = vmul.f32 %v587, 1.442695
        %v607 = vpow.pop %v606
        %v608 = vmul.f32 %v588, 1.442695
        %v609 = vpow.pop %v608
        %v610 = vmul.f32 %v589, 1.442695
        %v611 = vpow.pop %v610
        %v612 = vmul.f32 %v590, 1.442695
        %v613 = vpow.pop %v612
        %v614 = vmul.f32 %v591, 1.442695
        %v615 = vpow.pop %v614
        %616 = vst [vmem:[%s294] sm:$0xff] %v593
        %617 = vst [vmem:[%s294 + $0x8] sm:$0xff] %v595
        %618 = vst [vmem:[%s294 + $0x10] sm:$0xff] %v597
        %619 = vst [vmem:[%s294 + $0x18] sm:$0xff] %v599
        %620 = vst [vmem:[%s294 + $0x20] sm:$0xff] %v601
        %621 = vst [vmem:[%s294 + $0x28] sm:$0xff] %v603
        %622 = vst [vmem:[%s294 + $0x30] sm:$0xff] %v605
        %623 = vst [vmem:[%s294 + $0x38] sm:$0xff] %v607
        %624 = vst [vmem:[%s294 + $0x40] sm:$0xff] %v609
        %625 = vst [vmem:[%s294 + $0x48] sm:$0xff] %v611
        %626 = vst [vmem:[%s294 + $0x50] sm:$0xff] %v613
        %627 = vst [vmem:[%s294 + $0x58] sm:$0xff] %v615
        %s628 = sand.u32 %s141, 1
        %s629 = sand.u32 %s141, 1
        %s630 = smul.addr %s629, 96
        %s631 = scalar_lea.vmem [#allocation3], %s630
        // Predicated region
        $region75: #{tpu_custom_call.1} parent=69 // pred_check
          %p632 = pneg %p151
        $region76: #{tpu_custom_call.1} parent=69 // pred_check_branch
          %634 = sbr.rel (%p632) target = $region78
        $region77: #{tpu_custom_call.1} parent=69 // pred_region
          %s635 = smul.u32 12, %s19
          %s636 = smul.addr %s635, 2
          %s637 = sadd.s32 %s20, %s636
          %s638 = smul.addr %s637, 8
          %s639 = scalar_lea.vmem %s4, %s638
          // Predicated region
          $region79: #{tpu_custom_call.1} parent=77 // pred_check
            _
          $region80: #{tpu_custom_call.1} parent=77 // pred_check_branch
            %641 = sbr.rel (0) target = $region82
          $region81: #{tpu_custom_call.1} parent=77 // pred_region
            // Predicated region
            $region83: #{tpu_custom_call.1} parent=81 // pred_check
              _
            $region84: #{tpu_custom_call.1} parent=81 // pred_check_branch
              %643 = sbr.rel (0) target = $region86
            $region85: #{tpu_custom_call.1} parent=81 // pred_region
              // Predicated region
              $region98: #{tpu_custom_call.1} parent=85 // pred_check
                _
              $region99: #{tpu_custom_call.1} parent=85 // pred_check_branch
                %680 = sbr.rel (0) target = $region101
              $region100: #{tpu_custom_call.1} parent=85 // pred_region
                loop: start=0, step=1, limit=1
                $region102: #{tpu_custom_call.1} parent=100 // loop_pre_header
                  _
                $region103: #{tpu_custom_call.1} parent=100 // loop_header
                  %s682 = sphi 0, %s686
                  %p683 = scmp.ge.s32.totalorder %s682, 1
                  %s687 = sphi %s631, %s631
                  %s688 = sphi %s639, %s639
                $region104: #{tpu_custom_call.1} parent=100 // loop_header_branch
                  %685 = sbr.rel (%p683) target = $region108
                $region105: #{tpu_custom_call.1} parent=100 // loop_body
                  %v689 = vld [vmem:[%s687] sm:$0xff]
                  %690 = vst [vmem:[%s688] sm:$0xff] %v689
                  %v691 = vld [vmem:[%s687 + $0x8] sm:$0xff]
                  %692 = vst [vmem:[%s688 + $0x10] sm:$0xff] %v691
                  %v693 = vld [vmem:[%s687 + $0x10] sm:$0xff]
                  %694 = vst [vmem:[%s688 + $0x20] sm:$0xff] %v693
                  %v695 = vld [vmem:[%s687 + $0x18] sm:$0xff]
                  %696 = vst [vmem:[%s688 + $0x30] sm:$0xff] %v695
                  %v697 = vld [vmem:[%s687 + $0x20] sm:$0xff]
                  %698 = vst [vmem:[%s688 + $0x40] sm:$0xff] %v697
                  %v699 = vld [vmem:[%s687 + $0x28] sm:$0xff]
                  %700 = vst [vmem:[%s688 + $0x50] sm:$0xff] %v699
                  %v701 = vld [vmem:[%s687 + $0x30] sm:$0xff]
                  %702 = vst [vmem:[%s688 + $0x60] sm:$0xff] %v701
                  %v703 = vld [vmem:[%s687 + $0x38] sm:$0xff]
                  %704 = vst [vmem:[%s688 + $0x70] sm:$0xff] %v703
                  %v705 = vld [vmem:[%s687 + $0x40] sm:$0xff]
                  %706 = vst [vmem:[%s688 + $0x80] sm:$0xff] %v705
                  %v707 = vld [vmem:[%s687 + $0x48] sm:$0xff]
                  %708 = vst [vmem:[%s688 + $0x90] sm:$0xff] %v707
                  %v709 = vld [vmem:[%s687 + $0x50] sm:$0xff]
                  %710 = vst [vmem:[%s688 + $0xa0] sm:$0xff] %v709
                  %v711 = vld [vmem:[%s687 + $0x58] sm:$0xff]
                  %712 = vst [vmem:[%s688 + $0xb0] sm:$0xff] %v711
                $region106: #{tpu_custom_call.1} parent=100 // loop_footer
                  %s686 = sadd.s32 1, %s682
                $region107: #{tpu_custom_call.1} parent=100 // loop_footer_branch
                  %681 = sbr.rel target = $region103
                $region108: #{tpu_custom_call.1} parent=100 // loop_exit
                  _
              $region101: #{tpu_custom_call.1} parent=85 // pred_fallthru
                _
              // Predicated region
              $region109: #{tpu_custom_call.1} parent=85 // pred_check
                _
              $region110: #{tpu_custom_call.1} parent=85 // pred_check_branch
                %714 = sbr.rel target = $region112
              $region111: #{tpu_custom_call.1} parent=85 // pred_region
                _
              $region112: #{tpu_custom_call.1} parent=85 // pred_fallthru
                _
            $region86: #{tpu_custom_call.1} parent=81 // pred_fallthru
              _
            // Predicated region
            $region87: #{tpu_custom_call.1} parent=81 // pred_check
              _
            $region88: #{tpu_custom_call.1} parent=81 // pred_check_branch
              %645 = sbr.rel target = $region90
            $region89: #{tpu_custom_call.1} parent=81 // pred_region
              loop: start=0, step=1, limit=1
              $region91: #{tpu_custom_call.1} parent=89 // loop_pre_header
                _
              $region92: #{tpu_custom_call.1} parent=89 // loop_header
                %s648 = sphi 0, %s652
                %p649 = scmp.ge.s32.totalorder %s648, 1
                %s653 = sphi %s631, %s631
                %s654 = sphi %s639, %s639
              $region93: #{tpu_custom_call.1} parent=89 // loop_header_branch
                %651 = sbr.rel (%p649) target = $region97
              $region94: #{tpu_custom_call.1} parent=89 // loop_body
                %v655 = vld [vmem:[%s653] sm:$0xff]
                %656 = vst [vmem:[%s654] sm:$0xff] %v655
                %v657 = vld [vmem:[%s653 + $0x8] sm:$0xff]
                %658 = vst [vmem:[%s654 + $0x10] sm:$0xff] %v657
                %v659 = vld [vmem:[%s653 + $0x10] sm:$0xff]
                %660 = vst [vmem:[%s654 + $0x20] sm:$0xff] %v659
                %v661 = vld [vmem:[%s653 + $0x18] sm:$0xff]
                %662 = vst [vmem:[%s654 + $0x30] sm:$0xff] %v661
                %v663 = vld [vmem:[%s653 + $0x20] sm:$0xff]
                %664 = vst [vmem:[%s654 + $0x40] sm:$0xff] %v663
                %v665 = vld [vmem:[%s653 + $0x28] sm:$0xff]
                %666 = vst [vmem:[%s654 + $0x50] sm:$0xff] %v665
                %v667 = vld [vmem:[%s653 + $0x30] sm:$0xff]
                %668 = vst [vmem:[%s654 + $0x60] sm:$0xff] %v667
                %v669 = vld [vmem:[%s653 + $0x38] sm:$0xff]
                %670 = vst [vmem:[%s654 + $0x70] sm:$0xff] %v669
                %v671 = vld [vmem:[%s653 + $0x40] sm:$0xff]
                %672 = vst [vmem:[%s654 + $0x80] sm:$0xff] %v671
                %v673 = vld [vmem:[%s653 + $0x48] sm:$0xff]
                %674 = vst [vmem:[%s654 + $0x90] sm:$0xff] %v673
                %v675 = vld [vmem:[%s653 + $0x50] sm:$0xff]
                %676 = vst [vmem:[%s654 + $0xa0] sm:$0xff] %v675
                %v677 = vld [vmem:[%s653 + $0x58] sm:$0xff]
                %678 = vst [vmem:[%s654 + $0xb0] sm:$0xff] %v677
              $region95: #{tpu_custom_call.1} parent=89 // loop_footer
                %s652 = sadd.s32 1, %s648
              $region96: #{tpu_custom_call.1} parent=89 // loop_footer_branch
                %647 = sbr.rel target = $region92
              $region97: #{tpu_custom_call.1} parent=89 // loop_exit
                _
            $region90: #{tpu_custom_call.1} parent=81 // pred_fallthru
              _
          $region82: #{tpu_custom_call.1} parent=77 // pred_fallthru
            _
          %715 = vnop
        $region78: #{tpu_custom_call.1} parent=69 // pred_fallthru
          _
      $region70: #{tpu_custom_call.1} parent=5 // pred_fallthru
        _
      %p716 = scmp.le.s32.totalorder 2, %s10
      // Predicated region
      $region113: #{tpu_custom_call.1} parent=5 // pred_check
        %p717 = pneg %p716
      $region114: #{tpu_custom_call.1} parent=5 // pred_check_branch
        %719 = sbr.rel (%p717) target = $region116
      $region115: #{tpu_custom_call.1} parent=5 // pred_region
        %s720 = ssub.s32 %s10, 2
        // Predicated region
        $region117: #{tpu_custom_call.1} parent=115 // pred_check
          %p721 = pneg %p157
        $region118: #{tpu_custom_call.1} parent=115 // pred_check_branch
          %723 = sbr.rel (%p721) target = $region120
        $region119: #{tpu_custom_call.1} parent=115 // pred_region
          %s724 = sand.u32 %s142, 1
          %s725 = sand.u32 %s142, 1
          %s726 = smul.addr %s725, 96
          %s727 = scalar_lea.vmem [#allocation3], %s726
        $region120: #{tpu_custom_call.1} parent=115 // pred_fallthru
          _
      $region116: #{tpu_custom_call.1} parent=5 // pred_fallthru
        _
    $region6: #{tpu_custom_call.1} parent=1 // loop_footer
      %s14 = sadd.s32 1, %s10
    $region7: #{tpu_custom_call.1} parent=1 // loop_footer_branch
      %9 = sbr.rel target = $region3
    $region8: #{tpu_custom_call.1} parent=1 // loop_exit
      _

</llo_original>
